<compile_context>
chip_gen: v7x
topology: tpu7x:2x2x1
jax: 0.10.0
libtpu: 0.0.40
codegen_flags: <defaults>
</compile_context>

<pallas_src>
import functools

import numpy as np
import jax
import jax.numpy as jnp
from jax import lax
from jax.experimental import pallas as pl
from jax.experimental.pallas import tpu as pltpu


def make_kernel(k):
    """Same as the PyTorch make_kernel: outer product of a 1-D kernel, normalized."""
    arr = np.asarray(k, dtype=np.float32)
    if arr.ndim == 1:
        arr = arr[None, :] * arr[:, None]
    arr = arr / arr.sum()
    return arr


def _pad_crop(x3, pad0, pad1):
    """upfirdn2d-style padding on the last two dims of a (NC, H, W) array.

    Positive pads zero-pad; negative pads crop (matches upfirdn2d_native).
    """
    x3 = jnp.pad(
        x3,
        ((0, 0),
         (max(pad0, 0), max(pad1, 0)),
         (max(pad0, 0), max(pad1, 0))),
    )
    h, w = x3.shape[-2], x3.shape[-1]
    return x3[:,
              max(-pad0, 0): h - max(-pad1, 0),
              max(-pad0, 0): w - max(-pad1, 0)]


def _blur_kernel(x_ref, o_ref, *, taps, out_h, out_w):
    # x_ref: (tile_bc, Hp, Wp) padded f32 block, o_ref: (tile_bc, out_h, out_w)
    x = x_ref[...]
    acc = None
    # Fully unrolled over the (kh x kw) filter taps: shift-and-add on the VPU,
    # f32 accumulation, compile-time constant weights.
    for i, row in enumerate(taps):
        for j, w in enumerate(row):
            term = w * x[:, i:i + out_h, j:j + out_w]
            acc = term if acc is None else acc + term
    o_ref[...] = acc.astype(o_ref.dtype)


def _largest_divisor_leq(n, cap):
    cap = max(1, min(n, cap))
    for t in range(cap, 0, -1):
        if n % t == 0:
            return t
    return 1


def blur(x, kernel_1d, pad, upsample_factor=1):
    """Pallas implementation of Blur.forward.

    x:          (N, C, H, W) float array
    kernel_1d:  python list, e.g. [1, 3, 3, 1]
    pad:        (pad0, pad1) applied to both H and W (upfirdn2d convention)
    """
    k = make_kernel(kernel_1d)
    if upsample_factor > 1:
        k = k * (upsample_factor ** 2)
    # kernel.half() in the PyTorch module -> quantize taps to fp16 values.
    k = k.astype(np.float16).astype(np.float32)
    kh, kw = k.shape
    # conv2d(cross-correlation) with flipped kernel == true convolution with k.
    kf = np.ascontiguousarray(k[::-1, ::-1])
    taps = tuple(tuple(float(v) for v in row) for row in kf)

    pad0, pad1 = pad
    N, C, H, W = x.shape

    # input.half(): quantize to fp16, then compute in f32 inside the kernel.
    xf = x.astype(jnp.float16).astype(jnp.float32).reshape(N * C, H, W)
    xp = _pad_crop(xf, pad0, pad1)
    NC, Hp, Wp = xp.shape
    out_h = Hp - kh + 1
    out_w = Wp - kw + 1

    # Tile over the fused (N*C) axis; keep each input block under ~4 MiB so the
    # double-buffered in/out footprint stays far below scoped VMEM on v5e/v6e/v7x.
    vmem_cap_rows = (4 << 20) // max(1, Hp * Wp * 4)
    tile_bc = _largest_divisor_leq(NC, vmem_cap_rows)
    grid = (NC // tile_bc,)

    kern = functools.partial(_blur_kernel, taps=taps, out_h=out_h, out_w=out_w)

    out = pl.pallas_call(
        kern,
        out_shape=jax.ShapeDtypeStruct((NC, out_h, out_w), jnp.float32),
        grid=grid,
        in_specs=[pl.BlockSpec((tile_bc, Hp, Wp), lambda i: (i, 0, 0))],
        out_specs=pl.BlockSpec((tile_bc, out_h, out_w), lambda i: (i, 0, 0)),
        compiler_params=pltpu.CompilerParams(dimension_semantics=("parallel",)),
    )(xp)

    # Module returns the half-precision result of upfirdn2d.
    return out.reshape(N, C, out_h, out_w).astype(jnp.float16)


def blur_ref(x, kernel_1d, pad, upsample_factor=1):
    """Pure-JAX reference (lax.conv path) mirroring upfirdn2d(up=1, down=1)."""
    k = make_kernel(kernel_1d)
    if upsample_factor > 1:
        k = k * (upsample_factor ** 2)
    k = k.astype(np.float16).astype(np.float32)
    kf = jnp.asarray(np.ascontiguousarray(k[::-1, ::-1]))

    pad0, pad1 = pad
    N, C, H, W = x.shape
    xf = x.astype(jnp.float16).astype(jnp.float32).reshape(N * C, H, W)
    xp = _pad_crop(xf, pad0, pad1)
    out = lax.conv(xp[:, None, :, :], kf[None, None, :, :],
                   window_strides=(1, 1), padding="VALID")
    out_h, out_w = out.shape[-2], out.shape[-1]
    return out.reshape(N, C, out_h, out_w).astype(jnp.float16)


if __name__ == "__main__":
    key = jax.random.PRNGKey(0)
    # Small shapes consistent with a StyleGAN2 Blur layer.
    x = jax.random.normal(key, (2, 4, 16, 16), dtype=jnp.float32)

    ok = True
    # (kernel, pad) pairs as used around down/upsample in StyleGAN2.
    for kern1d, pad in (([1, 3, 3, 1], (2, 1)), ([1, 2, 1], (1, 1))):
        out = jax.block_until_ready(blur(x, kern1d, pad))
        ref = jax.block_until_ready(blur_ref(x, kern1d, pad))
        if out.shape != ref.shape:
            ok = False
            continue
        if not jnp.allclose(out.astype(jnp.float32), ref.astype(jnp.float32),
                            atol=2e-3, rtol=2e-3):
            ok = False

    if ok:
        print("KERNEL_OK")
</pallas_src>

<mosaic_0001>
module attributes {stable_mosaic.version = 11 : i64} {
  func.func @_blur_kernel(%arg0: i32, %arg1: memref<8x19x19xf32, #tpu.memory_space<vmem>>, %arg2: memref<8x16x16xf32, #tpu.memory_space<vmem>>) attributes {dimension_semantics = [#tpu.dimension_semantics<parallel>], iteration_bounds = array<i64: 1>, scalar_prefetch = 0 : i64, scratch_operands = 0 : i64, tpu.core_type = #tpu.core_type<tc>, window_params = [{transform_indices = @transform_0, window_bounds = array<i64: 8, 19, 19>}, {transform_indices = @transform_1, window_bounds = array<i64: 8, 16, 16>}]} {
    %c0 = arith.constant 0 : index
    %c0_0 = arith.constant 0 : index
    %c0_1 = arith.constant 0 : index
    %0 = vector.load %arg1[%c0, %c0_0, %c0_1] : memref<8x19x19xf32, #tpu.memory_space<vmem>>, vector<8x19x19xf32>
    %1 = vector.extract_strided_slice %0 {offsets = [0, 0, 0], sizes = [8, 16, 16], strides = [1, 1, 1]} : vector<8x19x19xf32> to vector<8x16x16xf32>
    %cst = arith.constant 1.562500e-02 : f32
    %2 = vector.broadcast %cst : f32 to vector<8x16x16xf32>
    %3 = arith.mulf %2, %1 : vector<8x16x16xf32>
    %4 = vector.extract_strided_slice %0 {offsets = [0, 0, 1], sizes = [8, 16, 16], strides = [1, 1, 1]} : vector<8x19x19xf32> to vector<8x16x16xf32>
    %cst_2 = arith.constant 4.687500e-02 : f32
    %5 = vector.broadcast %cst_2 : f32 to vector<8x16x16xf32>
    %6 = arith.mulf %5, %4 : vector<8x16x16xf32>
    %7 = arith.addf %3, %6 : vector<8x16x16xf32>
    %8 = vector.extract_strided_slice %0 {offsets = [0, 0, 2], sizes = [8, 16, 16], strides = [1, 1, 1]} : vector<8x19x19xf32> to vector<8x16x16xf32>
    %cst_3 = arith.constant 4.687500e-02 : f32
    %9 = vector.broadcast %cst_3 : f32 to vector<8x16x16xf32>
    %10 = arith.mulf %9, %8 : vector<8x16x16xf32>
    %11 = arith.addf %7, %10 : vector<8x16x16xf32>
    %12 = vector.extract_strided_slice %0 {offsets = [0, 0, 3], sizes = [8, 16, 16], strides = [1, 1, 1]} : vector<8x19x19xf32> to vector<8x16x16xf32>
    %cst_4 = arith.constant 1.562500e-02 : f32
    %13 = vector.broadcast %cst_4 : f32 to vector<8x16x16xf32>
    %14 = arith.mulf %13, %12 : vector<8x16x16xf32>
    %15 = arith.addf %11, %14 : vector<8x16x16xf32>
    %16 = vector.extract_strided_slice %0 {offsets = [0, 1, 0], sizes = [8, 16, 16], strides = [1, 1, 1]} : vector<8x19x19xf32> to vector<8x16x16xf32>
    %cst_5 = arith.constant 4.687500e-02 : f32
    %17 = vector.broadcast %cst_5 : f32 to vector<8x16x16xf32>
    %18 = arith.mulf %17, %16 : vector<8x16x16xf32>
    %19 = arith.addf %15, %18 : vector<8x16x16xf32>
    %20 = vector.extract_strided_slice %0 {offsets = [0, 1, 1], sizes = [8, 16, 16], strides = [1, 1, 1]} : vector<8x19x19xf32> to vector<8x16x16xf32>
    %cst_6 = arith.constant 1.406250e-01 : f32
    %21 = vector.broadcast %cst_6 : f32 to vector<8x16x16xf32>
    %22 = arith.mulf %21, %20 : vector<8x16x16xf32>
    %23 = arith.addf %19, %22 : vector<8x16x16xf32>
    %24 = vector.extract_strided_slice %0 {offsets = [0, 1, 2], sizes = [8, 16, 16], strides = [1, 1, 1]} : vector<8x19x19xf32> to vector<8x16x16xf32>
    %cst_7 = arith.constant 1.406250e-01 : f32
    %25 = vector.broadcast %cst_7 : f32 to vector<8x16x16xf32>
    %26 = arith.mulf %25, %24 : vector<8x16x16xf32>
    %27 = arith.addf %23, %26 : vector<8x16x16xf32>
    %28 = vector.extract_strided_slice %0 {offsets = [0, 1, 3], sizes = [8, 16, 16], strides = [1, 1, 1]} : vector<8x19x19xf32> to vector<8x16x16xf32>
    %cst_8 = arith.constant 4.687500e-02 : f32
    %29 = vector.broadcast %cst_8 : f32 to vector<8x16x16xf32>
    %30 = arith.mulf %29, %28 : vector<8x16x16xf32>
    %31 = arith.addf %27, %30 : vector<8x16x16xf32>
    %32 = vector.extract_strided_slice %0 {offsets = [0, 2, 0], sizes = [8, 16, 16], strides = [1, 1, 1]} : vector<8x19x19xf32> to vector<8x16x16xf32>
    %cst_9 = arith.constant 4.687500e-02 : f32
    %33 = vector.broadcast %cst_9 : f32 to vector<8x16x16xf32>
    %34 = arith.mulf %33, %32 : vector<8x16x16xf32>
    %35 = arith.addf %31, %34 : vector<8x16x16xf32>
    %36 = vector.extract_strided_slice %0 {offsets = [0, 2, 1], sizes = [8, 16, 16], strides = [1, 1, 1]} : vector<8x19x19xf32> to vector<8x16x16xf32>
    %cst_10 = arith.constant 1.406250e-01 : f32
    %37 = vector.broadcast %cst_10 : f32 to vector<8x16x16xf32>
    %38 = arith.mulf %37, %36 : vector<8x16x16xf32>
    %39 = arith.addf %35, %38 : vector<8x16x16xf32>
    %40 = vector.extract_strided_slice %0 {offsets = [0, 2, 2], sizes = [8, 16, 16], strides = [1, 1, 1]} : vector<8x19x19xf32> to vector<8x16x16xf32>
    %cst_11 = arith.constant 1.406250e-01 : f32
    %41 = vector.broadcast %cst_11 : f32 to vector<8x16x16xf32>
    %42 = arith.mulf %41, %40 : vector<8x16x16xf32>
    %43 = arith.addf %39, %42 : vector<8x16x16xf32>
    %44 = vector.extract_strided_slice %0 {offsets = [0, 2, 3], sizes = [8, 16, 16], strides = [1, 1, 1]} : vector<8x19x19xf32> to vector<8x16x16xf32>
    %cst_12 = arith.constant 4.687500e-02 : f32
    %45 = vector.broadcast %cst_12 : f32 to vector<8x16x16xf32>
    %46 = arith.mulf %45, %44 : vector<8x16x16xf32>
    %47 = arith.addf %43, %46 : vector<8x16x16xf32>
    %48 = vector.extract_strided_slice %0 {offsets = [0, 3, 0], sizes = [8, 16, 16], strides = [1, 1, 1]} : vector<8x19x19xf32> to vector<8x16x16xf32>
    %cst_13 = arith.constant 1.562500e-02 : f32
    %49 = vector.broadcast %cst_13 : f32 to vector<8x16x16xf32>
    %50 = arith.mulf %49, %48 : vector<8x16x16xf32>
    %51 = arith.addf %47, %50 : vector<8x16x16xf32>
    %52 = vector.extract_strided_slice %0 {offsets = [0, 3, 1], sizes = [8, 16, 16], strides = [1, 1, 1]} : vector<8x19x19xf32> to vector<8x16x16xf32>
    %cst_14 = arith.constant 4.687500e-02 : f32
    %53 = vector.broadcast %cst_14 : f32 to vector<8x16x16xf32>
    %54 = arith.mulf %53, %52 : vector<8x16x16xf32>
    %55 = arith.addf %51, %54 : vector<8x16x16xf32>
    %56 = vector.extract_strided_slice %0 {offsets = [0, 3, 2], sizes = [8, 16, 16], strides = [1, 1, 1]} : vector<8x19x19xf32> to vector<8x16x16xf32>
    %cst_15 = arith.constant 4.687500e-02 : f32
    %57 = vector.broadcast %cst_15 : f32 to vector<8x16x16xf32>
    %58 = arith.mulf %57, %56 : vector<8x16x16xf32>
    %59 = arith.addf %55, %58 : vector<8x16x16xf32>
    %60 = vector.extract_strided_slice %0 {offsets = [0, 3, 3], sizes = [8, 16, 16], strides = [1, 1, 1]} : vector<8x19x19xf32> to vector<8x16x16xf32>
    %cst_16 = arith.constant 1.562500e-02 : f32
    %61 = vector.broadcast %cst_16 : f32 to vector<8x16x16xf32>
    %62 = arith.mulf %61, %60 : vector<8x16x16xf32>
    %63 = arith.addf %59, %62 : vector<8x16x16xf32>
    %c0_17 = arith.constant 0 : index
    %c0_18 = arith.constant 0 : index
    %c0_19 = arith.constant 0 : index
    %64 = vector.load %arg2[%c0_17, %c0_18, %c0_19] : memref<8x16x16xf32, #tpu.memory_space<vmem>>, vector<8x16x16xf32>
    tpu.vector_store %arg2[%c0_17, %c0_18, %c0_19], %63 {strides = array<i32>} : memref<8x16x16xf32, #tpu.memory_space<vmem>>, vector<8x16x16xf32>,
    return
  }
  func.func @transform_0(%arg0: i32) -> (i32, i32, i32) {
    %c0_i32 = arith.constant 0 : i32
    %c0_i32_0 = arith.constant 0 : i32
    %c0_i32_1 = arith.constant 0 : i32
    return %arg0, %c0_i32, %c0_i32_0 : i32, i32, i32
  }
  func.func @transform_1(%arg0: i32) -> (i32, i32, i32) {
    %c0_i32 = arith.constant 0 : i32
    %c0_i32_0 = arith.constant 0 : i32
    %c0_i32_1 = arith.constant 0 : i32
    return %arg0, %c0_i32, %c0_i32_0 : i32, i32, i32
  }
}

</mosaic_0001>

<llo_original>
// kernel: tpu_custom_call.1
$region0: #{tpu_custom_call.1}
  #allocation0 [shape = 'u32[]', space=smem, size = 0x4, offset = 0x4, fixed_abs, tag = 'smem constant byte address 0x4 - core index']
  #allocation1 [shape = 'u32[144,128]{1,0:T(1,128)}', space=vmem, size = 0x12000, scoped, tag = 'internal scratch']
  %s0 = inlined_call_operand.vmem [shape: f32[8,19,19], index: 0, kind: input, shape index: {}]
  %s1 = inlined_call_operand.hbm [shape: f32[8,16,16], index: 1, kind: output, shape index: {}]
  %s2 = sld [smem:[#allocation0]]
  $region14: #{tpu_custom_call.1} parent=0
    _
  %s4 = ssub.s32 1, %s2
  %s5 = scalar_select 0, %s4, %s2
  $region1: #{tpu_custom_call.1} parent=0
    #allocation2 [shape = 'u8[65536]{0}', space=vmem, size = 0x10000, scoped, tag = 'output window, operand 0, single buffered']
    #allocation3 [shape = 's32[1]{0}', space=sflag, size = 0x4, scoped, tag = 'scoped memory for tpu_custom_call.1']
    %6 = vsyncpa [#allocation3], 0
    // Predicated region
    $region2: #{tpu_custom_call.1} parent=1 // pred_check
      _
    $region3: #{tpu_custom_call.1} parent=1 // pred_check_branch
      %8 = sbr.rel (0) target = $region5
    $region4: #{tpu_custom_call.1} parent=1 // pred_region
      _
    $region5: #{tpu_custom_call.1} parent=1 // pred_fallthru
      _
    %v9 = vld [vmem:[%s0] sm:$0xff]
    %v10 = vld [vmem:[%s0 + $0x8] sm:$0xff]
    %v11 = vld [vmem:[%s0 + $0x10] sm:$0x7]
    %v12 = vld [vmem:[%s0 + $0x18] sm:$0xff]
    %v13 = vld [vmem:[%s0 + $0x20] sm:$0xff]
    %v14 = vld [vmem:[%s0 + $0x28] sm:$0x7]
    %v15 = vld [vmem:[%s0 + $0x30] sm:$0xff]
    %v16 = vld [vmem:[%s0 + $0x38] sm:$0xff]
    %v17 = vld [vmem:[%s0 + $0x40] sm:$0x7]
    %v18 = vld [vmem:[%s0 + $0x48] sm:$0xff]
    %v19 = vld [vmem:[%s0 + $0x50] sm:$0xff]
    %v20 = vld [vmem:[%s0 + $0x58] sm:$0x7]
    %v21 = vld [vmem:[%s0 + $0x60] sm:$0xff]
    %v22 = vld [vmem:[%s0 + $0x68] sm:$0xff]
    %v23 = vld [vmem:[%s0 + $0x70] sm:$0x7]
    %v24 = vld [vmem:[%s0 + $0x78] sm:$0xff]
    %v25 = vld [vmem:[%s0 + $0x80] sm:$0xff]
    %v26 = vld [vmem:[%s0 + $0x88] sm:$0x7]
    %v27 = vld [vmem:[%s0 + $0x90] sm:$0xff]
    %v28 = vld [vmem:[%s0 + $0x98] sm:$0xff]
    %v29 = vld [vmem:[%s0 + $0xa0] sm:$0x7]
    %v30 = vld [vmem:[%s0 + $0xa8] sm:$0xff]
    %v31 = vld [vmem:[%s0 + $0xb0] sm:$0xff]
    %v32 = vld [vmem:[%s0 + $0xb8] sm:$0x7]
    %v33 = vmul.f32 %v9, 0.015625
    %v34 = vmul.f32 %v10, 0.015625
    %v35 = vmul.f32 %v12, 0.015625
    %v36 = vmul.f32 %v13, 0.015625
    %v37 = vmul.f32 %v15, 0.015625
    %v38 = vmul.f32 %v16, 0.015625
    %v39 = vmul.f32 %v18, 0.015625
    %v40 = vmul.f32 %v19, 0.015625
    %v41 = vmul.f32 %v21, 0.015625
    %v42 = vmul.f32 %v22, 0.015625
    %v43 = vmul.f32 %v24, 0.015625
    %v44 = vmul.f32 %v25, 0.015625
    %v45 = vmul.f32 %v27, 0.015625
    %v46 = vmul.f32 %v28, 0.015625
    %v47 = vmul.f32 %v30, 0.015625
    %v48 = vmul.f32 %v31, 0.015625
    %v49 = vmul.f32 %v9, 0.046875
    %v50 = vmul.f32 %v10, 0.046875
    %v51 = vmul.f32 %v12, 0.046875
    %v52 = vmul.f32 %v13, 0.046875
    %v53 = vmul.f32 %v15, 0.046875
    %v54 = vmul.f32 %v16, 0.046875
    %v55 = vmul.f32 %v18, 0.046875
    %v56 = vmul.f32 %v19, 0.046875
    %v57 = vmul.f32 %v21, 0.046875
    %v58 = vmul.f32 %v22, 0.046875
    %v59 = vmul.f32 %v24, 0.046875
    %v60 = vmul.f32 %v25, 0.046875
    %v61 = vmul.f32 %v27, 0.046875
    %v62 = vmul.f32 %v28, 0.046875
    %v63 = vmul.f32 %v30, 0.046875
    %v64 = vmul.f32 %v31, 0.046875
    %81 = vrot.lane.b32.xlu0 %v49, 127
    %v82 = vpop.permute.xlu0 %81
    %83 = vrot.lane.b32.xlu0 %v50, 127
    %v84 = vpop.permute.xlu0 %83
    %85 = vrot.lane.b32.xlu0 %v51, 127
    %v86 = vpop.permute.xlu0 %85
    %87 = vrot.lane.b32.xlu0 %v52, 127
    %v88 = vpop.permute.xlu0 %87
    %89 = vrot.lane.b32.xlu0 %v53, 127
    %v90 = vpop.permute.xlu0 %89
    %91 = vrot.lane.b32.xlu0 %v54, 127
    %v92 = vpop.permute.xlu0 %91
    %93 = vrot.lane.b32.xlu0 %v55, 127
    %v94 = vpop.permute.xlu0 %93
    %95 = vrot.lane.b32.xlu0 %v56, 127
    %v96 = vpop.permute.xlu0 %95
    %97 = vrot.lane.b32.xlu0 %v57, 127
    %v98 = vpop.permute.xlu0 %97
    %99 = vrot.lane.b32.xlu0 %v58, 127
    %v100 = vpop.permute.xlu0 %99
    %101 = vrot.lane.b32.xlu0 %v59, 127
    %v102 = vpop.permute.xlu0 %101
    %103 = vrot.lane.b32.xlu0 %v60, 127
    %v104 = vpop.permute.xlu0 %103
    %105 = vrot.lane.b32.xlu0 %v61, 127
    %v106 = vpop.permute.xlu0 %105
    %107 = vrot.lane.b32.xlu0 %v62, 127
    %v108 = vpop.permute.xlu0 %107
    %109 = vrot.lane.b32.xlu0 %v63, 127
    %v110 = vpop.permute.xlu0 %109
    %111 = vrot.lane.b32.xlu0 %v64, 127
    %v112 = vpop.permute.xlu0 %111
    %v129 = vadd.f32 %v33, %v82
    %v130 = vadd.f32 %v34, %v84
    %v131 = vadd.f32 %v35, %v86
    %v132 = vadd.f32 %v36, %v88
    %v133 = vadd.f32 %v37, %v90
    %v134 = vadd.f32 %v38, %v92
    %v135 = vadd.f32 %v39, %v94
    %v136 = vadd.f32 %v40, %v96
    %v137 = vadd.f32 %v41, %v98
    %v138 = vadd.f32 %v42, %v100
    %v139 = vadd.f32 %v43, %v102
    %v140 = vadd.f32 %v44, %v104
    %v141 = vadd.f32 %v45, %v106
    %v142 = vadd.f32 %v46, %v108
    %v143 = vadd.f32 %v47, %v110
    %v144 = vadd.f32 %v48, %v112
    %145 = vrot.lane.b32.xlu0 %v49, 126
    %v146 = vpop.permute.xlu0 %145
    %147 = vrot.lane.b32.xlu0 %v50, 126
    %v148 = vpop.permute.xlu0 %147
    %149 = vrot.lane.b32.xlu0 %v51, 126
    %v150 = vpop.permute.xlu0 %149
    %151 = vrot.lane.b32.xlu0 %v52, 126
    %v152 = vpop.permute.xlu0 %151
    %153 = vrot.lane.b32.xlu0 %v53, 126
    %v154 = vpop.permute.xlu0 %153
    %155 = vrot.lane.b32.xlu0 %v54, 126
    %v156 = vpop.permute.xlu0 %155
    %157 = vrot.lane.b32.xlu0 %v55, 126
    %v158 = vpop.permute.xlu0 %157
    %159 = vrot.lane.b32.xlu0 %v56, 126
    %v160 = vpop.permute.xlu0 %159
    %161 = vrot.lane.b32.xlu0 %v57, 126
    %v162 = vpop.permute.xlu0 %161
    %163 = vrot.lane.b32.xlu0 %v58, 126
    %v164 = vpop.permute.xlu0 %163
    %165 = vrot.lane.b32.xlu0 %v59, 126
    %v166 = vpop.permute.xlu0 %165
    %167 = vrot.lane.b32.xlu0 %v60, 126
    %v168 = vpop.permute.xlu0 %167
    %169 = vrot.lane.b32.xlu0 %v61, 126
    %v170 = vpop.permute.xlu0 %169
    %171 = vrot.lane.b32.xlu0 %v62, 126
    %v172 = vpop.permute.xlu0 %171
    %173 = vrot.lane.b32.xlu0 %v63, 126
    %v174 = vpop.permute.xlu0 %173
    %175 = vrot.lane.b32.xlu0 %v64, 126
    %v176 = vpop.permute.xlu0 %175
    %v193 = vadd.f32 %v129, %v146
    %v194 = vadd.f32 %v130, %v148
    %v195 = vadd.f32 %v131, %v150
    %v196 = vadd.f32 %v132, %v152
    %v197 = vadd.f32 %v133, %v154
    %v198 = vadd.f32 %v134, %v156
    %v199 = vadd.f32 %v135, %v158
    %v200 = vadd.f32 %v136, %v160
    %v201 = vadd.f32 %v137, %v162
    %v202 = vadd.f32 %v138, %v164
    %v203 = vadd.f32 %v139, %v166
    %v204 = vadd.f32 %v140, %v168
    %v205 = vadd.f32 %v141, %v170
    %v206 = vadd.f32 %v142, %v172
    %v207 = vadd.f32 %v143, %v174
    %v208 = vadd.f32 %v144, %v176
    %225 = vrot.lane.b32.xlu0 %v33, 125
    %v226 = vpop.permute.xlu0 %225
    %227 = vrot.lane.b32.xlu0 %v34, 125
    %v228 = vpop.permute.xlu0 %227
    %229 = vrot.lane.b32.xlu0 %v35, 125
    %v230 = vpop.permute.xlu0 %229
    %231 = vrot.lane.b32.xlu0 %v36, 125
    %v232 = vpop.permute.xlu0 %231
    %233 = vrot.lane.b32.xlu0 %v37, 125
    %v234 = vpop.permute.xlu0 %233
    %235 = vrot.lane.b32.xlu0 %v38, 125
    %v236 = vpop.permute.xlu0 %235
    %237 = vrot.lane.b32.xlu0 %v39, 125
    %v238 = vpop.permute.xlu0 %237
    %239 = vrot.lane.b32.xlu0 %v40, 125
    %v240 = vpop.permute.xlu0 %239
    %241 = vrot.lane.b32.xlu0 %v41, 125
    %v242 = vpop.permute.xlu0 %241
    %243 = vrot.lane.b32.xlu0 %v42, 125
    %v244 = vpop.permute.xlu0 %243
    %245 = vrot.lane.b32.xlu0 %v43, 125
    %v246 = vpop.permute.xlu0 %245
    %247 = vrot.lane.b32.xlu0 %v44, 125
    %v248 = vpop.permute.xlu0 %247
    %249 = vrot.lane.b32.xlu0 %v45, 125
    %v250 = vpop.permute.xlu0 %249
    %251 = vrot.lane.b32.xlu0 %v46, 125
    %v252 = vpop.permute.xlu0 %251
    %253 = vrot.lane.b32.xlu0 %v47, 125
    %v254 = vpop.permute.xlu0 %253
    %255 = vrot.lane.b32.xlu0 %v48, 125
    %v256 = vpop.permute.xlu0 %255
    %v273 = vadd.f32 %v193, %v226
    %v274 = vadd.f32 %v194, %v228
    %v275 = vadd.f32 %v195, %v230
    %v276 = vadd.f32 %v196, %v232
    %v277 = vadd.f32 %v197, %v234
    %v278 = vadd.f32 %v198, %v236
    %v279 = vadd.f32 %v199, %v238
    %v280 = vadd.f32 %v200, %v240
    %v281 = vadd.f32 %v201, %v242
    %v282 = vadd.f32 %v202, %v244
    %v283 = vadd.f32 %v203, %v246
    %v284 = vadd.f32 %v204, %v248
    %v285 = vadd.f32 %v205, %v250
    %v286 = vadd.f32 %v206, %v252
    %v287 = vadd.f32 %v207, %v254
    %v288 = vadd.f32 %v208, %v256
    %v289 = vmul.f32 %v11, 0.046875
    %v290 = vmul.f32 %v14, 0.046875
    %v291 = vmul.f32 %v17, 0.046875
    %v292 = vmul.f32 %v20, 0.046875
    %v293 = vmul.f32 %v23, 0.046875
    %v294 = vmul.f32 %v26, 0.046875
    %v295 = vmul.f32 %v29, 0.046875
    %v296 = vmul.f32 %v32, 0.046875
    %vm305 = vcmask 1046528
    %v306 = vrot.slane %v49, 1
    %v307 = vrot.slane %v50, 1
    %v308 = vsel %vm305, %v306, %v307
    %v309 = vrot.slane %v289, 1
    %v310 = vsel %vm305, %v307, %v309
    %v311 = vrot.slane %v51, 1
    %v312 = vrot.slane %v52, 1
    %v313 = vsel %vm305, %v311, %v312
    %v314 = vrot.slane %v290, 1
    %v315 = vsel %vm305, %v312, %v314
    %v316 = vrot.slane %v53, 1
    %v317 = vrot.slane %v54, 1
    %v318 = vsel %vm305, %v316, %v317
    %v319 = vrot.slane %v291, 1
    %v320 = vsel %vm305, %v317, %v319
    %v321 = vrot.slane %v55, 1
    %v322 = vrot.slane %v56, 1
    %v323 = vsel %vm305, %v321, %v322
    %v324 = vrot.slane %v292, 1
    %v325 = vsel %vm305, %v322, %v324
    %v326 = vrot.slane %v57, 1
    %v327 = vrot.slane %v58, 1
    %v328 = vsel %vm305, %v326, %v327
    %v329 = vrot.slane %v293, 1
    %v330 = vsel %vm305, %v327, %v329
    %v331 = vrot.slane %v59, 1
    %v332 = vrot.slane %v60, 1
    %v333 = vsel %vm305, %v331, %v332
    %v334 = vrot.slane %v294, 1
    %v335 = vsel %vm305, %v332, %v334
    %v336 = vrot.slane %v61, 1
    %v337 = vrot.slane %v62, 1
    %v338 = vsel %vm305, %v336, %v337
    %v339 = vrot.slane %v295, 1
    %v340 = vsel %vm305, %v337, %v339
    %v341 = vrot.slane %v63, 1
    %v342 = vrot.slane %v64, 1
    %v343 = vsel %vm305, %v341, %v342
    %v344 = vrot.slane %v296, 1
    %v345 = vsel %vm305, %v342, %v344
    %v362 = vadd.f32 %v273, %v308
    %v363 = vadd.f32 %v274, %v310
    %v364 = vadd.f32 %v275, %v313
    %v365 = vadd.f32 %v276, %v315
    %v366 = vadd.f32 %v277, %v318
    %v367 = vadd.f32 %v278, %v320
    %v368 = vadd.f32 %v279, %v323
    %v369 = vadd.f32 %v280, %v325
    %v370 = vadd.f32 %v281, %v328
    %v371 = vadd.f32 %v282, %v330
    %v372 = vadd.f32 %v283, %v333
    %v373 = vadd.f32 %v284, %v335
    %v374 = vadd.f32 %v285, %v338
    %v375 = vadd.f32 %v286, %v340
    %v376 = vadd.f32 %v287, %v343
    %v377 = vadd.f32 %v288, %v345
    %v378 = vmul.f32 %v9, 0.140625
    %v379 = vmul.f32 %v10, 0.140625
    %v380 = vmul.f32 %v11, 0.140625
    %v381 = vmul.f32 %v12, 0.140625
    %v382 = vmul.f32 %v13, 0.140625
    %v383 = vmul.f32 %v14, 0.140625
    %v384 = vmul.f32 %v15, 0.140625
    %v385 = vmul.f32 %v16, 0.140625
    %v386 = vmul.f32 %v17, 0.140625
    %v387 = vmul.f32 %v18, 0.140625
    %v388 = vmul.f32 %v19, 0.140625
    %v389 = vmul.f32 %v20, 0.140625
    %v390 = vmul.f32 %v21, 0.140625
    %v391 = vmul.f32 %v22, 0.140625
    %v392 = vmul.f32 %v23, 0.140625
    %v393 = vmul.f32 %v24, 0.140625
    %v394 = vmul.f32 %v25, 0.140625
    %v395 = vmul.f32 %v26, 0.140625
    %v396 = vmul.f32 %v27, 0.140625
    %v397 = vmul.f32 %v28, 0.140625
    %v398 = vmul.f32 %v29, 0.140625
    %v399 = vmul.f32 %v30, 0.140625
    %v400 = vmul.f32 %v31, 0.140625
    %v401 = vmul.f32 %v32, 0.140625
    %v426 = vrot.slane %v378, 1
    %v427 = vrot.slane %v379, 1
    %v428 = vsel %vm305, %v426, %v427
    %v429 = vrot.slane %v380, 1
    %v430 = vsel %vm305, %v427, %v429
    %v431 = vrot.slane %v381, 1
    %v432 = vrot.slane %v382, 1
    %v433 = vsel %vm305, %v431, %v432
    %v434 = vrot.slane %v383, 1
    %v435 = vsel %vm305, %v432, %v434
    %v436 = vrot.slane %v384, 1
    %v437 = vrot.slane %v385, 1
    %v438 = vsel %vm305, %v436, %v437
    %v439 = vrot.slane %v386, 1
    %v440 = vsel %vm305, %v437, %v439
    %v441 = vrot.slane %v387, 1
    %v442 = vrot.slane %v388, 1
    %v443 = vsel %vm305, %v441, %v442
    %v444 = vrot.slane %v389, 1
    %v445 = vsel %vm305, %v442, %v444
    %v446 = vrot.slane %v390, 1
    %v447 = vrot.slane %v391, 1
    %v448 = vsel %vm305, %v446, %v447
    %v449 = vrot.slane %v392, 1
    %v450 = vsel %vm305, %v447, %v449
    %v451 = vrot.slane %v393, 1
    %v452 = vrot.slane %v394, 1
    %v453 = vsel %vm305, %v451, %v452
    %v454 = vrot.slane %v395, 1
    %v455 = vsel %vm305, %v452, %v454
    %v456 = vrot.slane %v396, 1
    %v457 = vrot.slane %v397, 1
    %v458 = vsel %vm305, %v456, %v457
    %v459 = vrot.slane %v398, 1
    %v460 = vsel %vm305, %v457, %v459
    %v461 = vrot.slane %v399, 1
    %v462 = vrot.slane %v400, 1
    %v463 = vsel %vm305, %v461, %v462
    %v464 = vrot.slane %v401, 1
    %v465 = vsel %vm305, %v462, %v464
    %466 = vrot.lane.b32.xlu0 %v428, 127
    %v467 = vpop.permute.xlu0 %466
    %468 = vrot.lane.b32.xlu0 %v430, 127
    %v469 = vpop.permute.xlu0 %468
    %470 = vrot.lane.b32.xlu0 %v433, 127
    %v471 = vpop.permute.xlu0 %470
    %472 = vrot.lane.b32.xlu0 %v435, 127
    %v473 = vpop.permute.xlu0 %472
    %474 = vrot.lane.b32.xlu0 %v438, 127
    %v475 = vpop.permute.xlu0 %474
    %476 = vrot.lane.b32.xlu0 %v440, 127
    %v477 = vpop.permute.xlu0 %476
    %478 = vrot.lane.b32.xlu0 %v443, 127
    %v479 = vpop.permute.xlu0 %478
    %480 = vrot.lane.b32.xlu0 %v445, 127
    %v481 = vpop.permute.xlu0 %480
    %482 = vrot.lane.b32.xlu0 %v448, 127
    %v483 = vpop.permute.xlu0 %482
    %484 = vrot.lane.b32.xlu0 %v450, 127
    %v485 = vpop.permute.xlu0 %484
    %486 = vrot.lane.b32.xlu0 %v453, 127
    %v487 = vpop.permute.xlu0 %486
    %488 = vrot.lane.b32.xlu0 %v455, 127
    %v489 = vpop.permute.xlu0 %488
    %490 = vrot.lane.b32.xlu0 %v458, 127
    %v491 = vpop.permute.xlu0 %490
    %492 = vrot.lane.b32.xlu0 %v460, 127
    %v493 = vpop.permute.xlu0 %492
    %494 = vrot.lane.b32.xlu0 %v463, 127
    %v495 = vpop.permute.xlu0 %494
    %496 = vrot.lane.b32.xlu0 %v465, 127
    %v497 = vpop.permute.xlu0 %496
    %v514 = vadd.f32 %v362, %v467
    %v515 = vadd.f32 %v363, %v469
    %v516 = vadd.f32 %v364, %v471
    %v517 = vadd.f32 %v365, %v473
    %v518 = vadd.f32 %v366, %v475
    %v519 = vadd.f32 %v367, %v477
    %v520 = vadd.f32 %v368, %v479
    %v521 = vadd.f32 %v369, %v481
    %v522 = vadd.f32 %v370, %v483
    %v523 = vadd.f32 %v371, %v485
    %v524 = vadd.f32 %v372, %v487
    %v525 = vadd.f32 %v373, %v489
    %v526 = vadd.f32 %v374, %v491
    %v527 = vadd.f32 %v375, %v493
    %v528 = vadd.f32 %v376, %v495
    %v529 = vadd.f32 %v377, %v497
    %530 = vrot.lane.b32.xlu0 %v428, 126
    %v531 = vpop.permute.xlu0 %530
    %532 = vrot.lane.b32.xlu0 %v430, 126
    %v533 = vpop.permute.xlu0 %532
    %534 = vrot.lane.b32.xlu0 %v433, 126
    %v535 = vpop.permute.xlu0 %534
    %536 = vrot.lane.b32.xlu0 %v435, 126
    %v537 = vpop.permute.xlu0 %536
    %538 = vrot.lane.b32.xlu0 %v438, 126
    %v539 = vpop.permute.xlu0 %538
    %540 = vrot.lane.b32.xlu0 %v440, 126
    %v541 = vpop.permute.xlu0 %540
    %542 = vrot.lane.b32.xlu0 %v443, 126
    %v543 = vpop.permute.xlu0 %542
    %544 = vrot.lane.b32.xlu0 %v445, 126
    %v545 = vpop.permute.xlu0 %544
    %546 = vrot.lane.b32.xlu0 %v448, 126
    %v547 = vpop.permute.xlu0 %546
    %548 = vrot.lane.b32.xlu0 %v450, 126
    %v549 = vpop.permute.xlu0 %548
    %550 = vrot.lane.b32.xlu0 %v453, 126
    %v551 = vpop.permute.xlu0 %550
    %552 = vrot.lane.b32.xlu0 %v455, 126
    %v553 = vpop.permute.xlu0 %552
    %554 = vrot.lane.b32.xlu0 %v458, 126
    %v555 = vpop.permute.xlu0 %554
    %556 = vrot.lane.b32.xlu0 %v460, 126
    %v557 = vpop.permute.xlu0 %556
    %558 = vrot.lane.b32.xlu0 %v463, 126
    %v559 = vpop.permute.xlu0 %558
    %560 = vrot.lane.b32.xlu0 %v465, 126
    %v561 = vpop.permute.xlu0 %560
    %v578 = vadd.f32 %v514, %v531
    %v579 = vadd.f32 %v515, %v533
    %v580 = vadd.f32 %v516, %v535
    %v581 = vadd.f32 %v517, %v537
    %v582 = vadd.f32 %v518, %v539
    %v583 = vadd.f32 %v519, %v541
    %v584 = vadd.f32 %v520, %v543
    %v585 = vadd.f32 %v521, %v545
    %v586 = vadd.f32 %v522, %v547
    %v587 = vadd.f32 %v523, %v549
    %v588 = vadd.f32 %v524, %v551
    %v589 = vadd.f32 %v525, %v553
    %v590 = vadd.f32 %v526, %v555
    %v591 = vadd.f32 %v527, %v557
    %v592 = vadd.f32 %v528, %v559
    %v593 = vadd.f32 %v529, %v561
    %594 = vrot.lane.b32.xlu0 %v308, 125
    %v595 = vpop.permute.xlu0 %594
    %596 = vrot.lane.b32.xlu0 %v310, 125
    %v597 = vpop.permute.xlu0 %596
    %598 = vrot.lane.b32.xlu0 %v313, 125
    %v599 = vpop.permute.xlu0 %598
    %600 = vrot.lane.b32.xlu0 %v315, 125
    %v601 = vpop.permute.xlu0 %600
    %602 = vrot.lane.b32.xlu0 %v318, 125
    %v603 = vpop.permute.xlu0 %602
    %604 = vrot.lane.b32.xlu0 %v320, 125
    %v605 = vpop.permute.xlu0 %604
    %606 = vrot.lane.b32.xlu0 %v323, 125
    %v607 = vpop.permute.xlu0 %606
    %608 = vrot.lane.b32.xlu0 %v325, 125
    %v609 = vpop.permute.xlu0 %608
    %610 = vrot.lane.b32.xlu0 %v328, 125
    %v611 = vpop.permute.xlu0 %610
    %612 = vrot.lane.b32.xlu0 %v330, 125
    %v613 = vpop.permute.xlu0 %612
    %614 = vrot.lane.b32.xlu0 %v333, 125
    %v615 = vpop.permute.xlu0 %614
    %616 = vrot.lane.b32.xlu0 %v335, 125
    %v617 = vpop.permute.xlu0 %616
    %618 = vrot.lane.b32.xlu0 %v338, 125
    %v619 = vpop.permute.xlu0 %618
    %620 = vrot.lane.b32.xlu0 %v340, 125
    %v621 = vpop.permute.xlu0 %620
    %622 = vrot.lane.b32.xlu0 %v343, 125
    %v623 = vpop.permute.xlu0 %622
    %624 = vrot.lane.b32.xlu0 %v345, 125
    %v625 = vpop.permute.xlu0 %624
    %v642 = vadd.f32 %v578, %v595
    %v643 = vadd.f32 %v579, %v597
    %v644 = vadd.f32 %v580, %v599
    %v645 = vadd.f32 %v581, %v601
    %v646 = vadd.f32 %v582, %v603
    %v647 = vadd.f32 %v583, %v605
    %v648 = vadd.f32 %v584, %v607
    %v649 = vadd.f32 %v585, %v609
    %v650 = vadd.f32 %v586, %v611
    %v651 = vadd.f32 %v587, %v613
    %v652 = vadd.f32 %v588, %v615
    %v653 = vadd.f32 %v589, %v617
    %v654 = vadd.f32 %v590, %v619
    %v655 = vadd.f32 %v591, %v621
    %v656 = vadd.f32 %v592, %v623
    %v657 = vadd.f32 %v593, %v625
    %vm658 = vcmask 1045504
    %v659 = vrot.slane %v49, 2
    %v660 = vrot.slane %v50, 2
    %v661 = vsel %vm658, %v659, %v660
    %v662 = vrot.slane %v289, 2
    %v663 = vsel %vm658, %v660, %v662
    %v664 = vrot.slane %v51, 2
    %v665 = vrot.slane %v52, 2
    %v666 = vsel %vm658, %v664, %v665
    %v667 = vrot.slane %v290, 2
    %v668 = vsel %vm658, %v665, %v667
    %v669 = vrot.slane %v53, 2
    %v670 = vrot.slane %v54, 2
    %v671 = vsel %vm658, %v669, %v670
    %v672 = vrot.slane %v291, 2
    %v673 = vsel %vm658, %v670, %v672
    %v674 = vrot.slane %v55, 2
    %v675 = vrot.slane %v56, 2
    %v676 = vsel %vm658, %v674, %v675
    %v677 = vrot.slane %v292, 2
    %v678 = vsel %vm658, %v675, %v677
    %v679 = vrot.slane %v57, 2
    %v680 = vrot.slane %v58, 2
    %v681 = vsel %vm658, %v679, %v680
    %v682 = vrot.slane %v293, 2
    %v683 = vsel %vm658, %v680, %v682
    %v684 = vrot.slane %v59, 2
    %v685 = vrot.slane %v60, 2
    %v686 = vsel %vm658, %v684, %v685
    %v687 = vrot.slane %v294, 2
    %v688 = vsel %vm658, %v685, %v687
    %v689 = vrot.slane %v61, 2
    %v690 = vrot.slane %v62, 2
    %v691 = vsel %vm658, %v689, %v690
    %v692 = vrot.slane %v295, 2
    %v693 = vsel %vm658, %v690, %v692
    %v694 = vrot.slane %v63, 2
    %v695 = vrot.slane %v64, 2
    %v696 = vsel %vm658, %v694, %v695
    %v697 = vrot.slane %v296, 2
    %v698 = vsel %vm658, %v695, %v697
    %v715 = vadd.f32 %v642, %v661
    %v716 = vadd.f32 %v643, %v663
    %v717 = vadd.f32 %v644, %v666
    %v718 = vadd.f32 %v645, %v668
    %v719 = vadd.f32 %v646, %v671
    %v720 = vadd.f32 %v647, %v673
    %v721 = vadd.f32 %v648, %v676
    %v722 = vadd.f32 %v649, %v678
    %v723 = vadd.f32 %v650, %v681
    %v724 = vadd.f32 %v651, %v683
    %v725 = vadd.f32 %v652, %v686
    %v726 = vadd.f32 %v653, %v688
    %v727 = vadd.f32 %v654, %v691
    %v728 = vadd.f32 %v655, %v693
    %v729 = vadd.f32 %v656, %v696
    %v730 = vadd.f32 %v657, %v698
    %v731 = vrot.slane %v378, 2
    %v732 = vrot.slane %v379, 2
    %v733 = vsel %vm658, %v731, %v732
    %v734 = vrot.slane %v380, 2
    %v735 = vsel %vm658, %v732, %v734
    %v736 = vrot.slane %v381, 2
    %v737 = vrot.slane %v382, 2
    %v738 = vsel %vm658, %v736, %v737
    %v739 = vrot.slane %v383, 2
    %v740 = vsel %vm658, %v737, %v739
    %v741 = vrot.slane %v384, 2
    %v742 = vrot.slane %v385, 2
    %v743 = vsel %vm658, %v741, %v742
    %v744 = vrot.slane %v386, 2
    %v745 = vsel %vm658, %v742, %v744
    %v746 = vrot.slane %v387, 2
    %v747 = vrot.slane %v388, 2
    %v748 = vsel %vm658, %v746, %v747
    %v749 = vrot.slane %v389, 2
    %v750 = vsel %vm658, %v747, %v749
    %v751 = vrot.slane %v390, 2
    %v752 = vrot.slane %v391, 2
    %v753 = vsel %vm658, %v751, %v752
    %v754 = vrot.slane %v392, 2
    %v755 = vsel %vm658, %v752, %v754
    %v756 = vrot.slane %v393, 2
    %v757 = vrot.slane %v394, 2
    %v758 = vsel %vm658, %v756, %v757
    %v759 = vrot.slane %v395, 2
    %v760 = vsel %vm658, %v757, %v759
    %v761 = vrot.slane %v396, 2
    %v762 = vrot.slane %v397, 2
    %v763 = vsel %vm658, %v761, %v762
    %v764 = vrot.slane %v398, 2
    %v765 = vsel %vm658, %v762, %v764
    %v766 = vrot.slane %v399, 2
    %v767 = vrot.slane %v400, 2
    %v768 = vsel %vm658, %v766, %v767
    %v769 = vrot.slane %v401, 2
    %v770 = vsel %vm658, %v767, %v769
    %771 = vrot.lane.b32.xlu0 %v733, 127
    %v772 = vpop.permute.xlu0 %771
    %773 = vrot.lane.b32.xlu0 %v735, 127
    %v774 = vpop.permute.xlu0 %773
    %775 = vrot.lane.b32.xlu0 %v738, 127
    %v776 = vpop.permute.xlu0 %775
    %777 = vrot.lane.b32.xlu0 %v740, 127
    %v778 = vpop.permute.xlu0 %777
    %779 = vrot.lane.b32.xlu0 %v743, 127
    %v780 = vpop.permute.xlu0 %779
    %781 = vrot.lane.b32.xlu0 %v745, 127
    %v782 = vpop.permute.xlu0 %781
    %783 = vrot.lane.b32.xlu0 %v748, 127
    %v784 = vpop.permute.xlu0 %783
    %785 = vrot.lane.b32.xlu0 %v750, 127
    %v786 = vpop.permute.xlu0 %785
    %787 = vrot.lane.b32.xlu0 %v753, 127
    %v788 = vpop.permute.xlu0 %787
    %789 = vrot.lane.b32.xlu0 %v755, 127
    %v790 = vpop.permute.xlu0 %789
    %791 = vrot.lane.b32.xlu0 %v758, 127
    %v792 = vpop.permute.xlu0 %791
    %793 = vrot.lane.b32.xlu0 %v760, 127
    %v794 = vpop.permute.xlu0 %793
    %795 = vrot.lane.b32.xlu0 %v763, 127
    %v796 = vpop.permute.xlu0 %795
    %797 = vrot.lane.b32.xlu0 %v765, 127
    %v798 = vpop.permute.xlu0 %797
    %799 = vrot.lane.b32.xlu0 %v768, 127
    %v800 = vpop.permute.xlu0 %799
    %801 = vrot.lane.b32.xlu0 %v770, 127
    %v802 = vpop.permute.xlu0 %801
    %v819 = vadd.f32 %v715, %v772
    %v820 = vadd.f32 %v716, %v774
    %v821 = vadd.f32 %v717, %v776
    %v822 = vadd.f32 %v718, %v778
    %v823 = vadd.f32 %v719, %v780
    %v824 = vadd.f32 %v720, %v782
    %v825 = vadd.f32 %v721, %v784
    %v826 = vadd.f32 %v722, %v786
    %v827 = vadd.f32 %v723, %v788
    %v828 = vadd.f32 %v724, %v790
    %v829 = vadd.f32 %v725, %v792
    %v830 = vadd.f32 %v726, %v794
    %v831 = vadd.f32 %v727, %v796
    %v832 = vadd.f32 %v728, %v798
    %v833 = vadd.f32 %v729, %v800
    %v834 = vadd.f32 %v730, %v802
    %835 = vrot.lane.b32.xlu0 %v733, 126
    %v836 = vpop.permute.xlu0 %835
    %837 = vrot.lane.b32.xlu0 %v735, 126
    %v838 = vpop.permute.xlu0 %837
    %839 = vrot.lane.b32.xlu0 %v738, 126
    %v840 = vpop.permute.xlu0 %839
    %841 = vrot.lane.b32.xlu0 %v740, 126
    %v842 = vpop.permute.xlu0 %841
    %843 = vrot.lane.b32.xlu0 %v743, 126
    %v844 = vpop.permute.xlu0 %843
    %845 = vrot.lane.b32.xlu0 %v745, 126
    %v846 = vpop.permute.xlu0 %845
    %847 = vrot.lane.b32.xlu0 %v748, 126
    %v848 = vpop.permute.xlu0 %847
    %849 = vrot.lane.b32.xlu0 %v750, 126
    %v850 = vpop.permute.xlu0 %849
    %851 = vrot.lane.b32.xlu0 %v753, 126
    %v852 = vpop.permute.xlu0 %851
    %853 = vrot.lane.b32.xlu0 %v755, 126
    %v854 = vpop.permute.xlu0 %853
    %855 = vrot.lane.b32.xlu0 %v758, 126
    %v856 = vpop.permute.xlu0 %855
    %857 = vrot.lane.b32.xlu0 %v760, 126
    %v858 = vpop.permute.xlu0 %857
    %859 = vrot.lane.b32.xlu0 %v763, 126
    %v860 = vpop.permute.xlu0 %859
    %861 = vrot.lane.b32.xlu0 %v765, 126
    %v862 = vpop.permute.xlu0 %861
    %863 = vrot.lane.b32.xlu0 %v768, 126
    %v864 = vpop.permute.xlu0 %863
    %865 = vrot.lane.b32.xlu0 %v770, 126
    %v866 = vpop.permute.xlu0 %865
    %v883 = vadd.f32 %v819, %v836
    %v884 = vadd.f32 %v820, %v838
    %v885 = vadd.f32 %v821, %v840
    %v886 = vadd.f32 %v822, %v842
    %v887 = vadd.f32 %v823, %v844
    %v888 = vadd.f32 %v824, %v846
    %v889 = vadd.f32 %v825, %v848
    %v890 = vadd.f32 %v826, %v850
    %v891 = vadd.f32 %v827, %v852
    %v892 = vadd.f32 %v828, %v854
    %v893 = vadd.f32 %v829, %v856
    %v894 = vadd.f32 %v830, %v858
    %v895 = vadd.f32 %v831, %v860
    %v896 = vadd.f32 %v832, %v862
    %v897 = vadd.f32 %v833, %v864
    %v898 = vadd.f32 %v834, %v866
    %899 = vrot.lane.b32.xlu0 %v661, 125
    %v900 = vpop.permute.xlu0 %899
    %901 = vrot.lane.b32.xlu0 %v663, 125
    %v902 = vpop.permute.xlu0 %901
    %903 = vrot.lane.b32.xlu0 %v666, 125
    %v904 = vpop.permute.xlu0 %903
    %905 = vrot.lane.b32.xlu0 %v668, 125
    %v906 = vpop.permute.xlu0 %905
    %907 = vrot.lane.b32.xlu0 %v671, 125
    %v908 = vpop.permute.xlu0 %907
    %909 = vrot.lane.b32.xlu0 %v673, 125
    %v910 = vpop.permute.xlu0 %909
    %911 = vrot.lane.b32.xlu0 %v676, 125
    %v912 = vpop.permute.xlu0 %911
    %913 = vrot.lane.b32.xlu0 %v678, 125
    %v914 = vpop.permute.xlu0 %913
    %915 = vrot.lane.b32.xlu0 %v681, 125
    %v916 = vpop.permute.xlu0 %915
    %917 = vrot.lane.b32.xlu0 %v683, 125
    %v918 = vpop.permute.xlu0 %917
    %919 = vrot.lane.b32.xlu0 %v686, 125
    %v920 = vpop.permute.xlu0 %919
    %921 = vrot.lane.b32.xlu0 %v688, 125
    %v922 = vpop.permute.xlu0 %921
    %923 = vrot.lane.b32.xlu0 %v691, 125
    %v924 = vpop.permute.xlu0 %923
    %925 = vrot.lane.b32.xlu0 %v693, 125
    %v926 = vpop.permute.xlu0 %925
    %927 = vrot.lane.b32.xlu0 %v696, 125
    %v928 = vpop.permute.xlu0 %927
    %929 = vrot.lane.b32.xlu0 %v698, 125
    %v930 = vpop.permute.xlu0 %929
    %v947 = vadd.f32 %v883, %v900
    %v948 = vadd.f32 %v884, %v902
    %v949 = vadd.f32 %v885, %v904
    %v950 = vadd.f32 %v886, %v906
    %v951 = vadd.f32 %v887, %v908
    %v952 = vadd.f32 %v888, %v910
    %v953 = vadd.f32 %v889, %v912
    %v954 = vadd.f32 %v890, %v914
    %v955 = vadd.f32 %v891, %v916
    %v956 = vadd.f32 %v892, %v918
    %v957 = vadd.f32 %v893, %v920
    %v958 = vadd.f32 %v894, %v922
    %v959 = vadd.f32 %v895, %v924
    %v960 = vadd.f32 %v896, %v926
    %v961 = vadd.f32 %v897, %v928
    %v962 = vadd.f32 %v898, %v930
    %v963 = vmul.f32 %v11, 0.015625
    %v964 = vmul.f32 %v14, 0.015625
    %v965 = vmul.f32 %v17, 0.015625
    %v966 = vmul.f32 %v20, 0.015625
    %v967 = vmul.f32 %v23, 0.015625
    %v968 = vmul.f32 %v26, 0.015625
    %v969 = vmul.f32 %v29, 0.015625
    %v970 = vmul.f32 %v32, 0.015625
    %vm979 = vcmask 1044480
    %v980 = vrot.slane %v33, 3
    %v981 = vrot.slane %v34, 3
    %v982 = vsel %vm979, %v980, %v981
    %v983 = vrot.slane %v963, 3
    %v984 = vsel %vm979, %v981, %v983
    %v985 = vrot.slane %v35, 3
    %v986 = vrot.slane %v36, 3
    %v987 = vsel %vm979, %v985, %v986
    %v988 = vrot.slane %v964, 3
    %v989 = vsel %vm979, %v986, %v988
    %v990 = vrot.slane %v37, 3
    %v991 = vrot.slane %v38, 3
    %v992 = vsel %vm979, %v990, %v991
    %v993 = vrot.slane %v965, 3
    %v994 = vsel %vm979, %v991, %v993
    %v995 = vrot.slane %v39, 3
    %v996 = vrot.slane %v40, 3
    %v997 = vsel %vm979, %v995, %v996
    %v998 = vrot.slane %v966, 3
    %v999 = vsel %vm979, %v996, %v998
    %v1000 = vrot.slane %v41, 3
    %v1001 = vrot.slane %v42, 3
    %v1002 = vsel %vm979, %v1000, %v1001
    %v1003 = vrot.slane %v967, 3
    %v1004 = vsel %vm979, %v1001, %v1003
    %v1005 = vrot.slane %v43, 3
    %v1006 = vrot.slane %v44, 3
    %v1007 = vsel %vm979, %v1005, %v1006
    %v1008 = vrot.slane %v968, 3
    %v1009 = vsel %vm979, %v1006, %v1008
    %v1010 = vrot.slane %v45, 3
    %v1011 = vrot.slane %v46, 3
    %v1012 = vsel %vm979, %v1010, %v1011
    %v1013 = vrot.slane %v969, 3
    %v1014 = vsel %vm979, %v1011, %v1013
    %v1015 = vrot.slane %v47, 3
    %v1016 = vrot.slane %v48, 3
    %v1017 = vsel %vm979, %v1015, %v1016
    %v1018 = vrot.slane %v970, 3
    %v1019 = vsel %vm979, %v1016, %v1018
    %v1036 = vadd.f32 %v947, %v982
    %v1037 = vadd.f32 %v948, %v984
    %v1038 = vadd.f32 %v949, %v987
    %v1039 = vadd.f32 %v950, %v989
    %v1040 = vadd.f32 %v951, %v992
    %v1041 = vadd.f32 %v952, %v994
    %v1042 = vadd.f32 %v953, %v997
    %v1043 = vadd.f32 %v954, %v999
    %v1044 = vadd.f32 %v955, %v1002
    %v1045 = vadd.f32 %v956, %v1004
    %v1046 = vadd.f32 %v957, %v1007
    %v1047 = vadd.f32 %v958, %v1009
    %v1048 = vadd.f32 %v959, %v1012
    %v1049 = vadd.f32 %v960, %v1014
    %v1050 = vadd.f32 %v961, %v1017
    %v1051 = vadd.f32 %v962, %v1019
    %v1052 = vrot.slane %v49, 3
    %v1053 = vrot.slane %v50, 3
    %v1054 = vsel %vm979, %v1052, %v1053
    %v1055 = vrot.slane %v289, 3
    %v1056 = vsel %vm979, %v1053, %v1055
    %v1057 = vrot.slane %v51, 3
    %v1058 = vrot.slane %v52, 3
    %v1059 = vsel %vm979, %v1057, %v1058
    %v1060 = vrot.slane %v290, 3
    %v1061 = vsel %vm979, %v1058, %v1060
    %v1062 = vrot.slane %v53, 3
    %v1063 = vrot.slane %v54, 3
    %v1064 = vsel %vm979, %v1062, %v1063
    %v1065 = vrot.slane %v291, 3
    %v1066 = vsel %vm979, %v1063, %v1065
    %v1067 = vrot.slane %v55, 3
    %v1068 = vrot.slane %v56, 3
    %v1069 = vsel %vm979, %v1067, %v1068
    %v1070 = vrot.slane %v292, 3
    %v1071 = vsel %vm979, %v1068, %v1070
    %v1072 = vrot.slane %v57, 3
    %v1073 = vrot.slane %v58, 3
    %v1074 = vsel %vm979, %v1072, %v1073
    %v1075 = vrot.slane %v293, 3
    %v1076 = vsel %vm979, %v1073, %v1075
    %v1077 = vrot.slane %v59, 3
    %v1078 = vrot.slane %v60, 3
    %v1079 = vsel %vm979, %v1077, %v1078
    %v1080 = vrot.slane %v294, 3
    %v1081 = vsel %vm979, %v1078, %v1080
    %v1082 = vrot.slane %v61, 3
    %v1083 = vrot.slane %v62, 3
    %v1084 = vsel %vm979, %v1082, %v1083
    %v1085 = vrot.slane %v295, 3
    %v1086 = vsel %vm979, %v1083, %v1085
    %v1087 = vrot.slane %v63, 3
    %v1088 = vrot.slane %v64, 3
    %v1089 = vsel %vm979, %v1087, %v1088
    %v1090 = vrot.slane %v296, 3
    %v1091 = vsel %vm979, %v1088, %v1090
    %1092 = vrot.lane.b32.xlu0 %v1054, 127
    %v1093 = vpop.permute.xlu0 %1092
    %1094 = vrot.lane.b32.xlu0 %v1056, 127
    %v1095 = vpop.permute.xlu0 %1094
    %1096 = vrot.lane.b32.xlu0 %v1059, 127
    %v1097 = vpop.permute.xlu0 %1096
    %1098 = vrot.lane.b32.xlu0 %v1061, 127
    %v1099 = vpop.permute.xlu0 %1098
    %1100 = vrot.lane.b32.xlu0 %v1064, 127
    %v1101 = vpop.permute.xlu0 %1100
    %1102 = vrot.lane.b32.xlu0 %v1066, 127
    %v1103 = vpop.permute.xlu0 %1102
    %1104 = vrot.lane.b32.xlu0 %v1069, 127
    %v1105 = vpop.permute.xlu0 %1104
    %1106 = vrot.lane.b32.xlu0 %v1071, 127
    %v1107 = vpop.permute.xlu0 %1106
    %1108 = vrot.lane.b32.xlu0 %v1074, 127
    %v1109 = vpop.permute.xlu0 %1108
    %1110 = vrot.lane.b32.xlu0 %v1076, 127
    %v1111 = vpop.permute.xlu0 %1110
    %1112 = vrot.lane.b32.xlu0 %v1079, 127
    %v1113 = vpop.permute.xlu0 %1112
    %1114 = vrot.lane.b32.xlu0 %v1081, 127
    %v1115 = vpop.permute.xlu0 %1114
    %1116 = vrot.lane.b32.xlu0 %v1084, 127
    %v1117 = vpop.permute.xlu0 %1116
    %1118 = vrot.lane.b32.xlu0 %v1086, 127
    %v1119 = vpop.permute.xlu0 %1118
    %1120 = vrot.lane.b32.xlu0 %v1089, 127
    %v1121 = vpop.permute.xlu0 %1120
    %1122 = vrot.lane.b32.xlu0 %v1091, 127
    %v1123 = vpop.permute.xlu0 %1122
    %v1140 = vadd.f32 %v1036, %v1093
    %v1141 = vadd.f32 %v1037, %v1095
    %v1142 = vadd.f32 %v1038, %v1097
    %v1143 = vadd.f32 %v1039, %v1099
    %v1144 = vadd.f32 %v1040, %v1101
    %v1145 = vadd.f32 %v1041, %v1103
    %v1146 = vadd.f32 %v1042, %v1105
    %v1147 = vadd.f32 %v1043, %v1107
    %v1148 = vadd.f32 %v1044, %v1109
    %v1149 = vadd.f32 %v1045, %v1111
    %v1150 = vadd.f32 %v1046, %v1113
    %v1151 = vadd.f32 %v1047, %v1115
    %v1152 = vadd.f32 %v1048, %v1117
    %v1153 = vadd.f32 %v1049, %v1119
    %v1154 = vadd.f32 %v1050, %v1121
    %v1155 = vadd.f32 %v1051, %v1123
    %1156 = vrot.lane.b32.xlu0 %v1054, 126
    %v1157 = vpop.permute.xlu0 %1156
    %1158 = vrot.lane.b32.xlu0 %v1056, 126
    %v1159 = vpop.permute.xlu0 %1158
    %1160 = vrot.lane.b32.xlu0 %v1059, 126
    %v1161 = vpop.permute.xlu0 %1160
    %1162 = vrot.lane.b32.xlu0 %v1061, 126
    %v1163 = vpop.permute.xlu0 %1162
    %1164 = vrot.lane.b32.xlu0 %v1064, 126
    %v1165 = vpop.permute.xlu0 %1164
    %1166 = vrot.lane.b32.xlu0 %v1066, 126
    %v1167 = vpop.permute.xlu0 %1166
    %1168 = vrot.lane.b32.xlu0 %v1069, 126
    %v1169 = vpop.permute.xlu0 %1168
    %1170 = vrot.lane.b32.xlu0 %v1071, 126
    %v1171 = vpop.permute.xlu0 %1170
    %1172 = vrot.lane.b32.xlu0 %v1074, 126
    %v1173 = vpop.permute.xlu0 %1172
    %1174 = vrot.lane.b32.xlu0 %v1076, 126
    %v1175 = vpop.permute.xlu0 %1174
    %1176 = vrot.lane.b32.xlu0 %v1079, 126
    %v1177 = vpop.permute.xlu0 %1176
    %1178 = vrot.lane.b32.xlu0 %v1081, 126
    %v1179 = vpop.permute.xlu0 %1178
    %1180 = vrot.lane.b32.xlu0 %v1084, 126
    %v1181 = vpop.permute.xlu0 %1180
    %1182 = vrot.lane.b32.xlu0 %v1086, 126
    %v1183 = vpop.permute.xlu0 %1182
    %1184 = vrot.lane.b32.xlu0 %v1089, 126
    %v1185 = vpop.permute.xlu0 %1184
    %1186 = vrot.lane.b32.xlu0 %v1091, 126
    %v1187 = vpop.permute.xlu0 %1186
    %v1204 = vadd.f32 %v1140, %v1157
    %v1205 = vadd.f32 %v1141, %v1159
    %v1206 = vadd.f32 %v1142, %v1161
    %v1207 = vadd.f32 %v1143, %v1163
    %v1208 = vadd.f32 %v1144, %v1165
    %v1209 = vadd.f32 %v1145, %v1167
    %v1210 = vadd.f32 %v1146, %v1169
    %v1211 = vadd.f32 %v1147, %v1171
    %v1212 = vadd.f32 %v1148, %v1173
    %v1213 = vadd.f32 %v1149, %v1175
    %v1214 = vadd.f32 %v1150, %v1177
    %v1215 = vadd.f32 %v1151, %v1179
    %v1216 = vadd.f32 %v1152, %v1181
    %v1217 = vadd.f32 %v1153, %v1183
    %v1218 = vadd.f32 %v1154, %v1185
    %v1219 = vadd.f32 %v1155, %v1187
    %1220 = vrot.lane.b32.xlu0 %v982, 125
    %v1221 = vpop.permute.xlu0 %1220
    %1222 = vrot.lane.b32.xlu0 %v984, 125
    %v1223 = vpop.permute.xlu0 %1222
    %1224 = vrot.lane.b32.xlu0 %v987, 125
    %v1225 = vpop.permute.xlu0 %1224
    %1226 = vrot.lane.b32.xlu0 %v989, 125
    %v1227 = vpop.permute.xlu0 %1226
    %1228 = vrot.lane.b32.xlu0 %v992, 125
    %v1229 = vpop.permute.xlu0 %1228
    %1230 = vrot.lane.b32.xlu0 %v994, 125
    %v1231 = vpop.permute.xlu0 %1230
    %1232 = vrot.lane.b32.xlu0 %v997, 125
    %v1233 = vpop.permute.xlu0 %1232
    %1234 = vrot.lane.b32.xlu0 %v999, 125
    %v1235 = vpop.permute.xlu0 %1234
    %1236 = vrot.lane.b32.xlu0 %v1002, 125
    %v1237 = vpop.permute.xlu0 %1236
    %1238 = vrot.lane.b32.xlu0 %v1004, 125
    %v1239 = vpop.permute.xlu0 %1238
    %1240 = vrot.lane.b32.xlu0 %v1007, 125
    %v1241 = vpop.permute.xlu0 %1240
    %1242 = vrot.lane.b32.xlu0 %v1009, 125
    %v1243 = vpop.permute.xlu0 %1242
    %1244 = vrot.lane.b32.xlu0 %v1012, 125
    %v1245 = vpop.permute.xlu0 %1244
    %1246 = vrot.lane.b32.xlu0 %v1014, 125
    %v1247 = vpop.permute.xlu0 %1246
    %1248 = vrot.lane.b32.xlu0 %v1017, 125
    %v1249 = vpop.permute.xlu0 %1248
    %1250 = vrot.lane.b32.xlu0 %v1019, 125
    %v1251 = vpop.permute.xlu0 %1250
    %v1268 = vadd.f32 %v1204, %v1221
    %v1269 = vadd.f32 %v1205, %v1223
    %v1270 = vadd.f32 %v1206, %v1225
    %v1271 = vadd.f32 %v1207, %v1227
    %v1272 = vadd.f32 %v1208, %v1229
    %v1273 = vadd.f32 %v1209, %v1231
    %v1274 = vadd.f32 %v1210, %v1233
    %v1275 = vadd.f32 %v1211, %v1235
    %v1276 = vadd.f32 %v1212, %v1237
    %v1277 = vadd.f32 %v1213, %v1239
    %v1278 = vadd.f32 %v1214, %v1241
    %v1279 = vadd.f32 %v1215, %v1243
    %v1280 = vadd.f32 %v1216, %v1245
    %v1281 = vadd.f32 %v1217, %v1247
    %v1282 = vadd.f32 %v1218, %v1249
    %v1283 = vadd.f32 %v1219, %v1251
    %vm1284 = vcmask 130048
    %1285 = vst.msk [vmem:[#allocation2] sm:$0xff] %vm1284, %v1268
    %1286 = vst.msk [vmem:[#allocation2 + $0x8] sm:$0xff] %vm1284, %v1269
    %1287 = vst.msk [vmem:[#allocation2 + $0x10] sm:$0xff] %vm1284, %v1270
    %1288 = vst.msk [vmem:[#allocation2 + $0x18] sm:$0xff] %vm1284, %v1271
    %1289 = vst.msk [vmem:[#allocation2 + $0x20] sm:$0xff] %vm1284, %v1272
    %1290 = vst.msk [vmem:[#allocation2 + $0x28] sm:$0xff] %vm1284, %v1273
    %1291 = vst.msk [vmem:[#allocation2 + $0x30] sm:$0xff] %vm1284, %v1274
    %1292 = vst.msk [vmem:[#allocation2 + $0x38] sm:$0xff] %vm1284, %v1275
    %1293 = vst.msk [vmem:[#allocation2 + $0x40] sm:$0xff] %vm1284, %v1276
    %1294 = vst.msk [vmem:[#allocation2 + $0x48] sm:$0xff] %vm1284, %v1277
    %1295 = vst.msk [vmem:[#allocation2 + $0x50] sm:$0xff] %vm1284, %v1278
    %1296 = vst.msk [vmem:[#allocation2 + $0x58] sm:$0xff] %vm1284, %v1279
    %1297 = vst.msk [vmem:[#allocation2 + $0x60] sm:$0xff] %vm1284, %v1280
    %1298 = vst.msk [vmem:[#allocation2 + $0x68] sm:$0xff] %vm1284, %v1281
    %1299 = vst.msk [vmem:[#allocation2 + $0x70] sm:$0xff] %vm1284, %v1282
    %1300 = vst.msk [vmem:[#allocation2 + $0x78] sm:$0xff] %vm1284, %v1283
    // Predicated region
    $region6: #{tpu_custom_call.1} parent=1 // pred_check
      _
    $region7: #{tpu_custom_call.1} parent=1 // pred_check_branch
      %1302 = sbr.rel (0) target = $region9
    $region8: #{tpu_custom_call.1} parent=1 // pred_region
      %s1304 = ssub.s32 2048, 2048
      %1305 = vsyncadd [#allocation3], %s1304
      %s1306 = sshll.u32 [#allocation2], 4
      %s1307 = int_to_ptr.vmem [resolvable:$true] %s1306
      %1312 = dma.vmem_to_hbm [thread:$0]  %s1307, 2048, %s1, [#allocation3], 128, 128, 8
    $region9: #{tpu_custom_call.1} parent=1 // pred_fallthru
      _
    // Predicated region
    $region10: #{tpu_custom_call.1} parent=1 // pred_check
      _
    $region11: #{tpu_custom_call.1} parent=1 // pred_check_branch
      %1314 = sbr.rel (0) target = $region13
    $region12: #{tpu_custom_call.1} parent=1 // pred_region
      %1315 = dma.done [#allocation3], 2048
    $region13: #{tpu_custom_call.1} parent=1 // pred_fallthru
      _
    %1316 = vsyncpa [#allocation3], 1

</llo_original>
